<compile_context>
chip_gen: v5e
topology: v5e:2x2
jax: 0.10.0
libtpu: 0.0.40
codegen_flags: <defaults>
</compile_context>

<pallas_src>
import functools

import jax
import jax.numpy as jnp
from jax.experimental import pallas as pl
from jax.experimental.pallas import tpu as pltpu


# ----------------------------- Pallas kernel --------------------------------
def _if_neuron_kernel(x_ref, q_ref, acc_ref, out_ref, q_out_ref, acc_out_ref,
                      *, inv_threshold, q_threshold, pos_max, neg_max, eps):
    x = x_ref[...] * inv_threshold                      # x = input / q_threshold
    q = q_ref[...] + x                                  # integrate
    acc = jnp.round(acc_ref[...])                       # acc_q = round(acc_q)

    spike = (q - 1.0 >= 0.0) & (acc < pos_max)
    neg_spike = (q < -eps) & (acc > neg_max)
    cur = jnp.where(spike, 1.0, jnp.where(neg_spike, -1.0, 0.0))

    acc_out_ref[...] = acc + cur                        # new accumulated spikes
    q_out_ref[...] = q - cur                            # fire-and-subtract / add
    out_ref[...] = cur * q_threshold                    # emitted spike value


# ----------------------------- wrapper ---------------------------------------
def _flat_layout(total):
    """Pick a lane-dense (rows, cols) factorization of `total` elements."""
    LANE = 128
    if total % LANE == 0:
        cols = LANE
        while cols * 2 <= 512 and total % (cols * 2) == 0:
            cols *= 2
    else:
        cols = total                                     # tiny/odd sizes: single row
    rows = total // cols
    return rows, cols


def if_neuron_forward(x, q, acc_q, *, q_threshold, level, sym=False):
    """One IFNeuron timestep.

    x, q, acc_q : same shape (any rank).  Returns (output, q_new, acc_q_new).
    """
    if sym:
        pos_max = float(level // 2 - 1)
        neg_max = float((-level) // 2)
    else:
        pos_max = float(level - 1)
        neg_max = 0.0
    eps = 0.0

    orig_shape = x.shape
    total = int(x.size)
    rows, cols = _flat_layout(total)

    x2 = x.astype(jnp.float32).reshape(rows, cols)
    q2 = q.astype(jnp.float32).reshape(rows, cols)
    a2 = acc_q.astype(jnp.float32).reshape(rows, cols)

    # Row tile: biggest that keeps 6 arrays x double-buffer well under scoped VMEM
    # on all generations (v5e 16 MiB default).  512x512 f32 -> 12 MiB total.
    tm = rows if rows <= 512 else 512                    # 512 % 8 == 0
    grid = (pl.cdiv(rows, tm),)
    spec = pl.BlockSpec((tm, cols), lambda i: (i, 0))

    kern = functools.partial(
        _if_neuron_kernel,
        inv_threshold=float(1.0 / q_threshold),
        q_threshold=float(q_threshold),
        pos_max=pos_max,
        neg_max=neg_max,
        eps=eps,
    )

    out, q_new, acc_new = pl.pallas_call(
        kern,
        out_shape=(
            jax.ShapeDtypeStruct((rows, cols), jnp.float32),
            jax.ShapeDtypeStruct((rows, cols), jnp.float32),
            jax.ShapeDtypeStruct((rows, cols), jnp.float32),
        ),
        grid=grid,
        in_specs=[spec, spec, spec],
        out_specs=(spec, spec, spec),
        compiler_params=pltpu.CompilerParams(dimension_semantics=("parallel",)),
    )(x2, q2, a2)

    return (out.reshape(orig_shape),
            q_new.reshape(orig_shape),
            acc_new.reshape(orig_shape))


# ----------------------------- pure-JAX reference ----------------------------
def _if_neuron_ref(x, q, acc, q_threshold, pos_max, neg_max, eps=0.0):
    xx = x / q_threshold
    q = q + xx
    acc = jnp.round(acc)
    spike = (q - 1.0 >= 0.0) & (acc < pos_max)
    neg = (q < -eps) & (acc > neg_max)
    cur = jnp.where(spike, 1.0, jnp.where(neg, -1.0, 0.0))
    return cur * q_threshold, q - cur, acc + cur


# ----------------------------- main -------------------------------------------
if __name__ == "__main__":
    B, N, C = 2, 8, 32
    q_threshold = 1.0
    level = 8
    sym = False
    pos_max_ref = float(level - 1)
    neg_max_ref = 0.0

    key = jax.random.PRNGKey(0)
    k0, k1 = jax.random.split(key)

    # Fresh (post-reset) state: first tensor call sets q=0.5, acc_q=0, cur_output=0.
    q_state = jnp.full((B, N, C), 0.5, dtype=jnp.float32)
    acc_state = jnp.zeros((B, N, C), dtype=jnp.float32)

    ok = True
    for kk in (k0, k1):                                  # two timesteps to exercise state carry
        x = jax.random.normal(kk, (B, N, C), dtype=jnp.float32)
        out, q_state, acc_state = if_neuron_forward(
            x, q_state, acc_state, q_threshold=q_threshold, level=level, sym=sym)
        out = jax.block_until_ready(out)

        ref_out, ref_q, ref_acc = _if_neuron_ref(
            x, None, None, q_threshold, pos_max_ref, neg_max_ref) if False else (None, None, None)
        # (reference needs the same pre-step state; recompute it properly below)

    # Rerun both steps with the reference to validate end-to-end.
    q_r = jnp.full((B, N, C), 0.5, dtype=jnp.float32)
    a_r = jnp.zeros((B, N, C), dtype=jnp.float32)
    q_k = jnp.full((B, N, C), 0.5, dtype=jnp.float32)
    a_k = jnp.zeros((B, N, C), dtype=jnp.float32)
    for kk in (k0, k1):
        x = jax.random.normal(kk, (B, N, C), dtype=jnp.float32)
        o_k, q_k, a_k = if_neuron_forward(
            x, q_k, a_k, q_threshold=q_threshold, level=level, sym=sym)
        o_r, q_r, a_r = _if_neuron_ref(x, q_r, a_r, q_threshold, pos_max_ref, neg_max_ref)
        ok = ok and bool(jnp.allclose(o_k, o_r)) and bool(jnp.allclose(q_k, q_r)) \
            and bool(jnp.allclose(a_k, a_r))

    o_k = jax.block_until_ready(o_k)
    assert o_k.shape == (B, N, C)
    assert bool(jnp.all(jnp.isfinite(o_k)))
    assert ok, "Pallas IFNeuron does not match pure-JAX reference"
    print("KERNEL_OK")
</pallas_src>

<mosaic_0001>
module attributes {stable_mosaic.version = 11 : i64} {
  func.func @_if_neuron_kernel(%arg0: i32, %arg1: memref<1x512xf32, #tpu.memory_space<vmem>>, %arg2: memref<1x512xf32, #tpu.memory_space<vmem>>, %arg3: memref<1x512xf32, #tpu.memory_space<vmem>>, %arg4: memref<1x512xf32, #tpu.memory_space<vmem>>, %arg5: memref<1x512xf32, #tpu.memory_space<vmem>>, %arg6: memref<1x512xf32, #tpu.memory_space<vmem>>) attributes {dimension_semantics = [#tpu.dimension_semantics<parallel>], iteration_bounds = array<i64: 1>, scalar_prefetch = 0 : i64, scratch_operands = 0 : i64, tpu.core_type = #tpu.core_type<tc>, window_params = [{transform_indices = @transform_0, window_bounds = array<i64: 1, 512>}, {transform_indices = @transform_1, window_bounds = array<i64: 1, 512>}, {transform_indices = @transform_2, window_bounds = array<i64: 1, 512>}, {transform_indices = @transform_3, window_bounds = array<i64: 1, 512>}, {transform_indices = @transform_4, window_bounds = array<i64: 1, 512>}, {transform_indices = @transform_5, window_bounds = array<i64: 1, 512>}]} {
    %c0 = arith.constant 0 : index
    %c0_0 = arith.constant 0 : index
    %0 = vector.load %arg1[%c0, %c0_0] : memref<1x512xf32, #tpu.memory_space<vmem>>, vector<1x512xf32>
    %cst = arith.constant 1.000000e+00 : f32
    %1 = vector.broadcast %cst : f32 to vector<1x512xf32>
    %2 = arith.mulf %0, %1 : vector<1x512xf32>
    %c0_1 = arith.constant 0 : index
    %c0_2 = arith.constant 0 : index
    %3 = vector.load %arg2[%c0_1, %c0_2] : memref<1x512xf32, #tpu.memory_space<vmem>>, vector<1x512xf32>
    %4 = arith.addf %3, %2 : vector<1x512xf32>
    %c0_3 = arith.constant 0 : index
    %c0_4 = arith.constant 0 : index
    %5 = vector.load %arg3[%c0_3, %c0_4] : memref<1x512xf32, #tpu.memory_space<vmem>>, vector<1x512xf32>
    %6 = math.roundeven %5 : vector<1x512xf32>
    %cst_5 = arith.constant 1.000000e+00 : f32
    %7 = vector.broadcast %cst_5 : f32 to vector<1x512xf32>
    %8 = arith.subf %4, %7 : vector<1x512xf32>
    %cst_6 = arith.constant 0.000000e+00 : f32
    %9 = vector.broadcast %cst_6 : f32 to vector<1x512xf32>
    %10 = arith.cmpf oge, %8, %9 : vector<1x512xf32>
    %cst_7 = arith.constant 7.000000e+00 : f32
    %11 = vector.broadcast %cst_7 : f32 to vector<1x512xf32>
    %12 = arith.cmpf olt, %6, %11 : vector<1x512xf32>
    %13 = arith.andi %10, %12 : vector<1x512xi1>
    %cst_8 = arith.constant -0.000000e+00 : f32
    %14 = vector.broadcast %cst_8 : f32 to vector<1x512xf32>
    %15 = arith.cmpf olt, %4, %14 : vector<1x512xf32>
    %cst_9 = arith.constant 0.000000e+00 : f32
    %16 = vector.broadcast %cst_9 : f32 to vector<1x512xf32>
    %17 = arith.cmpf ogt, %6, %16 : vector<1x512xf32>
    %18 = arith.andi %15, %17 : vector<1x512xi1>
    %cst_10 = arith.constant -1.000000e+00 : f32
    %cst_11 = arith.constant 0.000000e+00 : f32
    %19 = vector.broadcast %cst_10 : f32 to vector<1x512xf32>
    %20 = vector.broadcast %cst_11 : f32 to vector<1x512xf32>
    %21 = arith.select %18, %19, %20 : vector<1x512xi1>, vector<1x512xf32>
    %cst_12 = arith.constant 1.000000e+00 : f32
    %22 = vector.broadcast %cst_12 : f32 to vector<1x512xf32>
    %23 = arith.select %13, %22, %21 : vector<1x512xi1>, vector<1x512xf32>
    %24 = arith.addf %6, %23 : vector<1x512xf32>
    %c0_13 = arith.constant 0 : index
    %c0_14 = arith.constant 0 : index
    %25 = vector.load %arg6[%c0_13, %c0_14] : memref<1x512xf32, #tpu.memory_space<vmem>>, vector<1x512xf32>
    tpu.vector_store %arg6[%c0_13, %c0_14], %24 {strides = array<i32>} : memref<1x512xf32, #tpu.memory_space<vmem>>, vector<1x512xf32>,
    %26 = arith.subf %4, %23 : vector<1x512xf32>
    %c0_15 = arith.constant 0 : index
    %c0_16 = arith.constant 0 : index
    %27 = vector.load %arg5[%c0_15, %c0_16] : memref<1x512xf32, #tpu.memory_space<vmem>>, vector<1x512xf32>
    tpu.vector_store %arg5[%c0_15, %c0_16], %26 {strides = array<i32>} : memref<1x512xf32, #tpu.memory_space<vmem>>, vector<1x512xf32>,
    %cst_17 = arith.constant 1.000000e+00 : f32
    %28 = vector.broadcast %cst_17 : f32 to vector<1x512xf32>
    %29 = arith.mulf %23, %28 : vector<1x512xf32>
    %c0_18 = arith.constant 0 : index
    %c0_19 = arith.constant 0 : index
    %30 = vector.load %arg4[%c0_18, %c0_19] : memref<1x512xf32, #tpu.memory_space<vmem>>, vector<1x512xf32>
    tpu.vector_store %arg4[%c0_18, %c0_19], %29 {strides = array<i32>} : memref<1x512xf32, #tpu.memory_space<vmem>>, vector<1x512xf32>,
    return
  }
  func.func @transform_0(%arg0: i32) -> (i32, i32) {
    %c0_i32 = arith.constant 0 : i32
    %c0_i32_0 = arith.constant 0 : i32
    return %arg0, %c0_i32 : i32, i32
  }
  func.func @transform_1(%arg0: i32) -> (i32, i32) {
    %c0_i32 = arith.constant 0 : i32
    %c0_i32_0 = arith.constant 0 : i32
    return %arg0, %c0_i32 : i32, i32
  }
  func.func @transform_2(%arg0: i32) -> (i32, i32) {
    %c0_i32 = arith.constant 0 : i32
    %c0_i32_0 = arith.constant 0 : i32
    return %arg0, %c0_i32 : i32, i32
  }
  func.func @transform_3(%arg0: i32) -> (i32, i32) {
    %c0_i32 = arith.constant 0 : i32
    %c0_i32_0 = arith.constant 0 : i32
    return %arg0, %c0_i32 : i32, i32
  }
  func.func @transform_4(%arg0: i32) -> (i32, i32) {
    %c0_i32 = arith.constant 0 : i32
    %c0_i32_0 = arith.constant 0 : i32
    return %arg0, %c0_i32 : i32, i32
  }
  func.func @transform_5(%arg0: i32) -> (i32, i32) {
    %c0_i32 = arith.constant 0 : i32
    %c0_i32_0 = arith.constant 0 : i32
    return %arg0, %c0_i32 : i32, i32
  }
}

</mosaic_0001>

<llo_original>
// kernel: tpu_custom_call.1
$region0: #{tpu_custom_call.1}
  #allocation0 [shape = 'u32[]', space=smem, size = 0x4, offset = 0x4, fixed_abs, tag = 'smem constant byte address 0x4 - core index']
  #allocation1 [shape = 'u32[72,128]{1,0:T(1,128)}', space=vmem, size = 0x9000, scoped, tag = 'internal scratch']
  %s0 = inlined_call_operand.hbm [shape: f32[1,512], index: 0, kind: input, shape index: {}]
  %s1 = inlined_call_operand.hbm [shape: f32[1,512], index: 1, kind: input, shape index: {}]
  %s2 = inlined_call_operand.hbm [shape: f32[1,512], index: 2, kind: input, shape index: {}]
  %s3 = inlined_call_operand.hbm [shape: f32[1,512], index: 3, kind: output, shape index: {0}]
  %s4 = inlined_call_operand.hbm [shape: f32[1,512], index: 4, kind: output, shape index: {1}]
  %s5 = inlined_call_operand.hbm [shape: f32[1,512], index: 5, kind: output, shape index: {2}]
  %6 = xla_tuple %s3, %s4, %s5
  %s7 = sld [smem:[#allocation0]]
  $region50: #{tpu_custom_call.1} parent=0
    _
  %s9 = ssub.s32 1, %s7
  %s10 = scalar_select 0, %s9, %s7
  $region1: #{tpu_custom_call.1} parent=0
    #allocation2 [shape = 'u8[2048]{0}', space=vmem, size = 0x800, scoped, tag = 'input window, operand 0, single buffered']
    #allocation3 [shape = 's32[1]{0}', space=sflag, size = 0x4, scoped, tag = 'scoped memory for tpu_custom_call.1']
    #allocation4 [shape = 's32[1]{0}', space=sflag, size = 0x4, scoped, tag = 'scoped memory for tpu_custom_call.1']
    #allocation5 [shape = 'u8[2048]{0}', space=vmem, size = 0x800, scoped, tag = 'input window, operand 1, single buffered']
    #allocation6 [shape = 's32[1]{0}', space=sflag, size = 0x4, scoped, tag = 'scoped memory for tpu_custom_call.1']
    #allocation7 [shape = 'u8[2048]{0}', space=vmem, size = 0x800, scoped, tag = 'input window, operand 2, single buffered']
    #allocation8 [shape = 'u8[2048]{0}', space=vmem, size = 0x800, scoped, tag = 'output window, operand 0, single buffered']
    #allocation9 [shape = 'u8[2048]{0}', space=vmem, size = 0x800, scoped, tag = 'output window, operand 1, single buffered']
    #allocation10 [shape = 's32[1]{0}', space=sflag, size = 0x4, scoped, tag = 'scoped memory for tpu_custom_call.1']
    #allocation11 [shape = 'u8[2048]{0}', space=vmem, size = 0x800, scoped, tag = 'output window, operand 2, single buffered']
    %11 = vsyncpa [#allocation3], 0
    %12 = vsyncpa [#allocation6], 0
    %13 = vsyncpa [#allocation4], 0
    %14 = vsyncpa [#allocation10], 0
    // Predicated region
    $region2: #{tpu_custom_call.1} parent=1 // pred_check
      _
    $region3: #{tpu_custom_call.1} parent=1 // pred_check_branch
      %16 = sbr.rel (0) target = $region5
    $region4: #{tpu_custom_call.1} parent=1 // pred_region
      %18 = vsyncadd [#allocation3], 0
      %s20 = sshll.u32 %s0, 4
      %s21 = int_to_ptr.hbm [resolvable:$true] %s20
      %s22 = sshll.u32 [#allocation2], 4
      %s23 = int_to_ptr.vmem [resolvable:$true] %s22
      %25 = dma.hbm_to_vmem [thread:$0]  %s21, 64, %s23, [#allocation3]
    $region5: #{tpu_custom_call.1} parent=1 // pred_fallthru
      _
    // Predicated region
    $region6: #{tpu_custom_call.1} parent=1 // pred_check
      _
    $region7: #{tpu_custom_call.1} parent=1 // pred_check_branch
      %27 = sbr.rel (0) target = $region9
    $region8: #{tpu_custom_call.1} parent=1 // pred_region
      %29 = vsyncadd [#allocation6], 0
      %s31 = sshll.u32 %s1, 4
      %s32 = int_to_ptr.hbm [resolvable:$true] %s31
      %s33 = sshll.u32 [#allocation5], 4
      %s34 = int_to_ptr.vmem [resolvable:$true] %s33
      %36 = dma.hbm_to_vmem [thread:$0]  %s32, 64, %s34, [#allocation6]
    $region9: #{tpu_custom_call.1} parent=1 // pred_fallthru
      _
    // Predicated region
    $region10: #{tpu_custom_call.1} parent=1 // pred_check
      _
    $region11: #{tpu_custom_call.1} parent=1 // pred_check_branch
      %38 = sbr.rel (0) target = $region13
    $region12: #{tpu_custom_call.1} parent=1 // pred_region
      %40 = vsyncadd [#allocation6], 0
      %s42 = sshll.u32 %s2, 4
      %s43 = int_to_ptr.hbm [resolvable:$true] %s42
      %s44 = sshll.u32 [#allocation7], 4
      %s45 = int_to_ptr.vmem [resolvable:$true] %s44
      %47 = dma.hbm_to_vmem [thread:$0]  %s43, 64, %s45, [#allocation6]
    $region13: #{tpu_custom_call.1} parent=1 // pred_fallthru
      _
    // Predicated region
    $region14: #{tpu_custom_call.1} parent=1 // pred_check
      _
    $region15: #{tpu_custom_call.1} parent=1 // pred_check_branch
      %49 = sbr.rel (0) target = $region17
    $region16: #{tpu_custom_call.1} parent=1 // pred_region
      %51 = dma.done [#allocation3], 64
    $region17: #{tpu_custom_call.1} parent=1 // pred_fallthru
      _
    // Predicated region
    $region18: #{tpu_custom_call.1} parent=1 // pred_check
      _
    $region19: #{tpu_custom_call.1} parent=1 // pred_check_branch
      %53 = sbr.rel (0) target = $region21
    $region20: #{tpu_custom_call.1} parent=1 // pred_region
      %55 = dma.done [#allocation6], 64
    $region21: #{tpu_custom_call.1} parent=1 // pred_fallthru
      _
    // Predicated region
    $region22: #{tpu_custom_call.1} parent=1 // pred_check
      _
    $region23: #{tpu_custom_call.1} parent=1 // pred_check_branch
      %57 = sbr.rel (0) target = $region25
    $region24: #{tpu_custom_call.1} parent=1 // pred_region
      %59 = dma.done [#allocation6], 64
    $region25: #{tpu_custom_call.1} parent=1 // pred_fallthru
      _
    %v60 = vld [vmem:[#allocation2] sm:$0xf]
    %v61 = vld [vmem:[#allocation5] sm:$0xf]
    %v62 = vadd.f32 %v61, %v60
    %v63 = vld [vmem:[#allocation7] sm:$0xf]
    %v64 = vround.ne.pseudo %v63
    %v65 = vsub.f32 %v62, 1.0
    %vm66 = vcmp.ge.f32.partialorder %v65, 0.0
    %vm67 = vcmp.lt.f32.partialorder %v64, 7.0
    %vm68 = vmand %vm66, %vm67
    %vm69 = vcmp.lt.f32.partialorder %v62, -0.0
    %vm70 = vcmp.gt.f32.partialorder %v64, 0.0
    %vm71 = vmand %vm69, %vm70
    %v72 = vsel %vm71, -1.0, 0.0
    %v73 = vsel %vm68, 1.0, %v72
    %v74 = vadd.f32 %v64, %v73
    %v75 = vlaneseq
    %vm76 = vcmp.ge.s32.totalorder %v75, 0
    %vm77 = vcmp.lt.s32.totalorder %v75, 512
    %vm78 = vmand %vm76, %vm77
    %79 = vst.msk [vmem:[#allocation11] sm:$0xf] %vm78, %v74
    %v80 = vsub.f32 %v62, %v73
    %81 = vst.msk [vmem:[#allocation9] sm:$0xf] %vm78, %v80
    %82 = vst.msk [vmem:[#allocation8] sm:$0xf] %vm78, %v73
    // Predicated region
    $region26: #{tpu_custom_call.1} parent=1 // pred_check
      _
    $region27: #{tpu_custom_call.1} parent=1 // pred_check_branch
      %84 = sbr.rel (0) target = $region29
    $region28: #{tpu_custom_call.1} parent=1 // pred_region
      %86 = vsyncadd [#allocation4], 0
      %s88 = sshll.u32 [#allocation8], 4
      %s89 = int_to_ptr.vmem [resolvable:$true] %s88
      %s90 = sshll.u32 %s3, 4
      %s91 = int_to_ptr.hbm [resolvable:$true] %s90
      %93 = dma.vmem_to_hbm [thread:$0]  %s89, 64, %s91, [#allocation4]
    $region29: #{tpu_custom_call.1} parent=1 // pred_fallthru
      _
    // Predicated region
    $region30: #{tpu_custom_call.1} parent=1 // pred_check
      _
    $region31: #{tpu_custom_call.1} parent=1 // pred_check_branch
      %95 = sbr.rel (0) target = $region33
    $region32: #{tpu_custom_call.1} parent=1 // pred_region
      %97 = vsyncadd [#allocation10], 0
      %s99 = sshll.u32 [#allocation9], 4
      %s100 = int_to_ptr.vmem [resolvable:$true] %s99
      %s101 = sshll.u32 %s4, 4
      %s102 = int_to_ptr.hbm [resolvable:$true] %s101
      %104 = dma.vmem_to_hbm [thread:$0]  %s100, 64, %s102, [#allocation10]
    $region33: #{tpu_custom_call.1} parent=1 // pred_fallthru
      _
    // Predicated region
    $region34: #{tpu_custom_call.1} parent=1 // pred_check
      _
    $region35: #{tpu_custom_call.1} parent=1 // pred_check_branch
      %106 = sbr.rel (0) target = $region37
    $region36: #{tpu_custom_call.1} parent=1 // pred_region
      %108 = vsyncadd [#allocation10], 0
      %s110 = sshll.u32 [#allocation11], 4
      %s111 = int_to_ptr.vmem [resolvable:$true] %s110
      %s112 = sshll.u32 %s5, 4
      %s113 = int_to_ptr.hbm [resolvable:$true] %s112
      %115 = dma.vmem_to_hbm [thread:$0]  %s111, 64, %s113, [#allocation10]
    $region37: #{tpu_custom_call.1} parent=1 // pred_fallthru
      _
    // Predicated region
    $region38: #{tpu_custom_call.1} parent=1 // pred_check
      _
    $region39: #{tpu_custom_call.1} parent=1 // pred_check_branch
      %117 = sbr.rel (0) target = $region41
    $region40: #{tpu_custom_call.1} parent=1 // pred_region
      %119 = dma.done [#allocation4], 64
    $region41: #{tpu_custom_call.1} parent=1 // pred_fallthru
      _
    // Predicated region
    $region42: #{tpu_custom_call.1} parent=1 // pred_check
      _
    $region43: #{tpu_custom_call.1} parent=1 // pred_check_branch
      %121 = sbr.rel (0) target = $region45
    $region44: #{tpu_custom_call.1} parent=1 // pred_region
      %123 = dma.done [#allocation10], 64
    $region45: #{tpu_custom_call.1} parent=1 // pred_fallthru
      _
    // Predicated region
    $region46: #{tpu_custom_call.1} parent=1 // pred_check
      _
    $region47: #{tpu_custom_call.1} parent=1 // pred_check_branch
      %125 = sbr.rel (0) target = $region49
    $region48: #{tpu_custom_call.1} parent=1 // pred_region
      %127 = dma.done [#allocation10], 64
    $region49: #{tpu_custom_call.1} parent=1 // pred_fallthru
      _
    %128 = vsyncpa [#allocation3], 1
    %129 = vsyncpa [#allocation6], 1
    %130 = vsyncpa [#allocation4], 1
    %131 = vsyncpa [#allocation10], 1

</llo_original>
